<compile_context>
chip_gen: v5e
topology: v5e:2x2
jax: 0.10.0
libtpu: 0.0.40
codegen_flags: <defaults>
</compile_context>

<pallas_src>
import functools

import numpy as np
import jax
import jax.numpy as jnp
from jax.experimental import pallas as pl
from jax.experimental.pallas import tpu as pltpu

EPS = 1e-5
NEG_SLOPE = 0.2   # LeakyReLU(0.2)
H1, H2 = 128, 256  # hidden sizes fixed by the module


def _round_up(n, m):
    return (n + m - 1) // m * m


def discriminator_kernel(x_ref, w1_ref, w2_ref, slab_ref, out_ref, acc_ref, *, batch):
    """Grid axis 0 tiles the K(=D) reduction of the first matmul ('arbitrary')."""
    k = pl.program_id(0)

    @pl.when(k == 0)
    def _init():
        acc_ref[...] = jnp.zeros_like(acc_ref)

    # Streamed chunk of Linear(D -> 128): bf16 x bf16 -> f32 accumulate on the MXU.
    acc_ref[...] += jnp.dot(x_ref[...], w1_ref[...],
                            preferred_element_type=jnp.float32)

    @pl.when(k == pl.num_programs(0) - 1)
    def _finish():
        # Packed parameter slab: one DMA for all small vectors.
        slab = slab_ref[...]                      # (8, 256) f32
        b1, g1, be1 = slab[0:1, :H1], slab[1:2, :H1], slab[2:3, :H1]
        b2, g2, be2 = slab[3:4, :], slab[4:5, :], slab[5:6, :]
        w3_row = slab[6:7, :]                     # (1, 256)
        b3 = slab[7:8, 0:1]                       # (1, 1)

        # Row mask: BN statistics use only the `batch` real rows (padding-safe).
        bp = acc_ref.shape[0]
        rows = jax.lax.broadcasted_iota(jnp.int32, (bp, 1), 0)
        mask = (rows < batch).astype(jnp.float32)
        inv_b = jnp.float32(1.0 / batch)

        def bn_leaky(h, g, be):
            m = jnp.sum(h * mask, axis=0, keepdims=True) * inv_b
            d = h - m
            v = jnp.sum(d * d * mask, axis=0, keepdims=True) * inv_b  # biased var (PyTorch BN)
            hn = d * jax.lax.rsqrt(v + EPS) * g + be
            return jnp.where(hn >= 0, hn, NEG_SLOPE * hn)

        # Layer 1 epilogue: bias + BN + LeakyReLU (f32).
        h1 = bn_leaky(acc_ref[...] + b1, g1, be1)

        # Linear(128 -> 256) + BN + LeakyReLU. bf16 operands, f32 accumulation.
        h2 = jnp.dot(h1.astype(jnp.bfloat16), w2_ref[...],
                     preferred_element_type=jnp.float32) + b2
        h2 = bn_leaky(h2, g2, be2)

        # Linear(256 -> 1) + Sigmoid: VPU multiply + lane reduction (avoid N=1 MXU matmul).
        logits = jnp.sum(h2 * w3_row, axis=-1, keepdims=True) + b3
        out_ref[...] = jax.nn.sigmoid(logits)


def discriminator_forward(audio, params, *, tk=512):
    """audio: (B, C, n_mels, T) float32 -> validity (B, 1) float32."""
    B = audio.shape[0]
    x = audio.reshape(B, -1)                       # same as audio.view(B, -1)
    D = x.shape[1]
    (w1, b1, g1, be1, w2, b2, g2, be2, w3, b3) = params

    # Pad batch to a sublane-friendly multiple (masked BN keeps semantics exact),
    # and pad D to a multiple of the K tile (zero padding contributes nothing).
    B_pad = _round_up(max(B, 1), 16)
    tk = min(tk, _round_up(D, 128))
    D_pad = _round_up(D, tk)
    n_k = D_pad // tk

    # Dominant HBM streams in bf16; elementwise / accumulation math stays f32.
    x_bf = x.astype(jnp.bfloat16)
    w1_bf = w1.astype(jnp.bfloat16)
    x_p = jnp.zeros((B_pad, D_pad), jnp.bfloat16).at[:B, :D].set(x_bf)
    w1_p = jnp.zeros((D_pad, H1), jnp.bfloat16).at[:D, :].set(w1_bf)
    w2_bf = w2.astype(jnp.bfloat16)

    # Pack all small parameters into one (8, 256) f32 slab (single DMA).
    slab = jnp.zeros((8, H2), jnp.float32)
    slab = slab.at[0, :H1].set(b1.reshape(-1))
    slab = slab.at[1, :H1].set(g1.reshape(-1))
    slab = slab.at[2, :H1].set(be1.reshape(-1))
    slab = slab.at[3, :].set(b2.reshape(-1))
    slab = slab.at[4, :].set(g2.reshape(-1))
    slab = slab.at[5, :].set(be2.reshape(-1))
    slab = slab.at[6, :].set(w3.reshape(-1))
    slab = slab.at[7, 0].set(b3[0, 0])

    kernel = functools.partial(discriminator_kernel, batch=B)

    # Explicit VMEM budget (double-buffered tiles + resident w2/slab + accumulator),
    # with generous headroom; independent of D, safe on v5e (16 MiB) and v7x.
    tile_bytes = (2 * (B_pad * tk + tk * H1) * 2        # bf16 x / w1 tiles (x2 buffers)
                  + 2 * (H1 * H2) * 2 + 2 * 8 * H2 * 4  # w2 (bf16) + slab (f32)
                  + B_pad * H1 * 4                      # accumulator scratch
                  + 2 * B_pad * 4)                      # output block
    vmem_limit = int(min(max(4 * tile_bytes, 8 << 20), 96 << 20))

    out = pl.pallas_call(
        kernel,
        out_shape=jax.ShapeDtypeStruct((B_pad, 1), jnp.float32),
        grid_spec=pltpu.PrefetchScalarGridSpec(
            num_scalar_prefetch=0,
            grid=(n_k,),
            in_specs=[
                pl.BlockSpec((B_pad, tk), lambda k: (0, k)),   # x: stream K chunks
                pl.BlockSpec((tk, H1), lambda k: (k, 0)),      # w1: stream K chunks
                pl.BlockSpec((H1, H2), lambda k: (0, 0)),      # w2: resident
                pl.BlockSpec((8, H2), lambda k: (0, 0)),       # packed bias/BN slab
            ],
            out_specs=pl.BlockSpec((B_pad, 1), lambda k: (0, 0)),
            scratch_shapes=[pltpu.VMEM((B_pad, H1), jnp.float32)],
        ),
        compiler_params=pltpu.CompilerParams(
            dimension_semantics=("arbitrary",),   # K reduction: output revisited
            vmem_limit_bytes=vmem_limit,
        ),
    )(x_p, w1_p, w2_bf, slab)

    return out[:B]


def init_params(key, in_features):
    """Deterministic init of Linear / BatchNorm parameters (synthetic weights)."""
    ks = jax.random.split(key, 6)

    def linear(k, fan_in, fan_out):
        bound = 1.0 / np.sqrt(fan_in)
        kw, kb = jax.random.split(k)
        w = jax.random.uniform(kw, (fan_in, fan_out), jnp.float32, -bound, bound)
        b = jax.random.uniform(kb, (1, fan_out), jnp.float32, -bound, bound)
        return w, b

    w1, b1 = linear(ks[0], in_features, H1)
    w2, b2 = linear(ks[1], H1, H2)
    w3, b3 = linear(ks[2], H2, 1)

    # Non-trivial BN affine params so the BN path is exercised.
    g1 = 1.0 + 0.1 * jax.random.normal(ks[3], (1, H1), jnp.float32)
    be1 = 0.1 * jax.random.normal(ks[4], (1, H1), jnp.float32)
    g2 = 1.0 + 0.1 * jax.random.normal(ks[5], (1, H2), jnp.float32)
    be2 = 0.05 * jnp.ones((1, H2), jnp.float32)

    return (w1, b1, g1, be1, w2, b2, g2, be2, w3, b3)


def reference_forward(audio, params):
    """Pure-JAX reference using the same bf16 matmul operands / f32 math."""
    B = audio.shape[0]
    x = audio.reshape(B, -1)
    (w1, b1, g1, be1, w2, b2, g2, be2, w3, b3) = params

    def bn_leaky(h, g, be):
        m = jnp.mean(h, axis=0, keepdims=True)
        v = jnp.mean((h - m) ** 2, axis=0, keepdims=True)
        hn = (h - m) * jax.lax.rsqrt(v + EPS) * g + be
        return jnp.where(hn >= 0, hn, NEG_SLOPE * hn)

    h1 = jnp.dot(x.astype(jnp.bfloat16), w1.astype(jnp.bfloat16),
                 preferred_element_type=jnp.float32) + b1
    h1 = bn_leaky(h1, g1, be1)
    h2 = jnp.dot(h1.astype(jnp.bfloat16), w2.astype(jnp.bfloat16),
                 preferred_element_type=jnp.float32) + b2
    h2 = bn_leaky(h2, g2, be2)
    logits = jnp.sum(h2 * w3.reshape(1, -1), axis=-1, keepdims=True) + b3
    return jax.nn.sigmoid(logits)


if __name__ == "__main__":
    # Small, module-consistent shapes: per-sample input_shape = (1, n_mels, time_steps)
    # scaled down to (1, 8, 256) -> flattened feature dim D = 2048 (4 K-tiles); batch = 4.
    B, C, N_MELS, T = 4, 1, 8, 256
    key = jax.random.PRNGKey(0)
    k_audio, k_params = jax.random.split(key)

    audio = jax.random.normal(k_audio, (B, C, N_MELS, T), jnp.float32)
    params = init_params(k_params, C * N_MELS * T)

    validity = jax.block_until_ready(discriminator_forward(audio, params))
    ref = jax.block_until_ready(reference_forward(audio, params))

    # Tolerance reflects the deliberate bf16 matmul operands (same rounding in both paths;
    # residual differences come only from f32 accumulation order).
    np.testing.assert_allclose(np.asarray(validity), np.asarray(ref),
                               rtol=1e-4, atol=1e-4)
    assert validity.shape == (B, 1)

    print("KERNEL_OK")
</pallas_src>

<mosaic_0001>
module attributes {stable_mosaic.version = 11 : i64} {
  func.func @discriminator_kernel(%arg0: i32, %arg1: memref<16x512xbf16, #tpu.memory_space<vmem>>, %arg2: memref<512x128xbf16, #tpu.memory_space<vmem>>, %arg3: memref<128x256xbf16, #tpu.memory_space<vmem>>, %arg4: memref<8x256xf32, #tpu.memory_space<vmem>>, %arg5: memref<16x1xf32, #tpu.memory_space<vmem>>, %arg6: memref<16x128xf32, #tpu.memory_space<vmem>>) attributes {dimension_semantics = [#tpu.dimension_semantics<arbitrary>], iteration_bounds = array<i64: 4>, scalar_prefetch = 0 : i64, scratch_operands = 1 : i64, tpu.core_type = #tpu.core_type<tc>, window_params = [{transform_indices = @transform_0, window_bounds = array<i64: 16, 512>}, {transform_indices = @transform_1, window_bounds = array<i64: 512, 128>}, {pipeline_mode = #tpu.pipeline_mode<synchronous>, transform_indices = @transform_2, window_bounds = array<i64: 128, 256>}, {pipeline_mode = #tpu.pipeline_mode<synchronous>, transform_indices = @transform_3, window_bounds = array<i64: 8, 256>}, {pipeline_mode = #tpu.pipeline_mode<synchronous>, transform_indices = @transform_4, window_bounds = array<i64: 16, 1>}]} {
    %c0_i32 = arith.constant 0 : i32
    %0 = arith.cmpi eq, %arg0, %c0_i32 : i32
    %1 = arith.extui %0 : i1 to i32
    %c0_i32_0 = arith.constant 0 : i32
    %2 = arith.cmpi ne, %1, %c0_i32_0 : i32
    scf.if %2 {
      %cst_9 = arith.constant 0.000000e+00 : f32
      %12 = vector.broadcast %cst_9 : f32 to vector<16x128xf32>
      %c0_10 = arith.constant 0 : index
      %c0_11 = arith.constant 0 : index
      %13 = vector.load %arg6[%c0_10, %c0_11] : memref<16x128xf32, #tpu.memory_space<vmem>>, vector<16x128xf32>
      tpu.vector_store %arg6[%c0_10, %c0_11], %12 {strides = array<i32>} : memref<16x128xf32, #tpu.memory_space<vmem>>, vector<16x128xf32>,
    } else {
    }
    %c0 = arith.constant 0 : index
    %c0_1 = arith.constant 0 : index
    %3 = vector.load %arg6[%c0, %c0_1] : memref<16x128xf32, #tpu.memory_space<vmem>>, vector<16x128xf32>
    %c0_2 = arith.constant 0 : index
    %c0_3 = arith.constant 0 : index
    %4 = vector.load %arg1[%c0_2, %c0_3] : memref<16x512xbf16, #tpu.memory_space<vmem>>, vector<16x512xbf16>
    %c0_4 = arith.constant 0 : index
    %c0_5 = arith.constant 0 : index
    %5 = vector.load %arg2[%c0_4, %c0_5] : memref<512x128xbf16, #tpu.memory_space<vmem>>, vector<512x128xbf16>
    %cst = arith.constant dense<0.000000e+00> : vector<16x128xf32>
    %6 = tpu.matmul %4, %5, %cst {dimension_numbers = #tpu.dot_dimension_numbers<[1], [0], [0], [1], [0, 0, 1, 1], [], []>} : vector<16x512xbf16>, vector<512x128xbf16>, vector<16x128xf32> -> vector<16x128xf32>
    %7 = arith.addf %3, %6 : vector<16x128xf32>
    %c0_6 = arith.constant 0 : index
    %c0_7 = arith.constant 0 : index
    %8 = vector.load %arg6[%c0_6, %c0_7] : memref<16x128xf32, #tpu.memory_space<vmem>>, vector<16x128xf32>
    tpu.vector_store %arg6[%c0_6, %c0_7], %7 {strides = array<i32>} : memref<16x128xf32, #tpu.memory_space<vmem>>, vector<16x128xf32>,
    %c3_i32 = arith.constant 3 : i32
    %9 = arith.cmpi eq, %arg0, %c3_i32 : i32
    %10 = arith.extui %9 : i1 to i32
    %c0_i32_8 = arith.constant 0 : i32
    %11 = arith.cmpi ne, %10, %c0_i32_8 : i32
    scf.if %11 {
      %c0_9 = arith.constant 0 : index
      %c0_10 = arith.constant 0 : index
      %12 = vector.load %arg4[%c0_9, %c0_10] : memref<8x256xf32, #tpu.memory_space<vmem>>, vector<8x256xf32>
      %13 = vector.extract_strided_slice %12 {offsets = [0, 0], sizes = [1, 128], strides = [1, 1]} : vector<8x256xf32> to vector<1x128xf32>
      %14 = vector.extract_strided_slice %12 {offsets = [1, 0], sizes = [1, 128], strides = [1, 1]} : vector<8x256xf32> to vector<1x128xf32>
      %15 = vector.extract_strided_slice %12 {offsets = [2, 0], sizes = [1, 128], strides = [1, 1]} : vector<8x256xf32> to vector<1x128xf32>
      %16 = vector.extract_strided_slice %12 {offsets = [3, 0], sizes = [1, 256], strides = [1, 1]} : vector<8x256xf32> to vector<1x256xf32>
      %17 = vector.extract_strided_slice %12 {offsets = [4, 0], sizes = [1, 256], strides = [1, 1]} : vector<8x256xf32> to vector<1x256xf32>
      %18 = vector.extract_strided_slice %12 {offsets = [5, 0], sizes = [1, 256], strides = [1, 1]} : vector<8x256xf32> to vector<1x256xf32>
      %19 = vector.extract_strided_slice %12 {offsets = [6, 0], sizes = [1, 256], strides = [1, 1]} : vector<8x256xf32> to vector<1x256xf32>
      %20 = vector.extract_strided_slice %12 {offsets = [7, 0], sizes = [1, 1], strides = [1, 1]} : vector<8x256xf32> to vector<1x1xf32>
      %21 = tpu.iota {dimensions = array<i32: 0>} : vector<16x1xi32>
      %c4_i32 = arith.constant 4 : i32
      %22 = vector.broadcast %c4_i32 : i32 to vector<16x1xi32>
      %23 = arith.cmpi slt, %21, %22 : vector<16x1xi32>
      %24 = arith.extui %23 : vector<16x1xi1> to vector<16x1xi32>
      %25 = arith.sitofp %24 : vector<16x1xi32> to vector<16x1xf32>
      %c0_11 = arith.constant 0 : index
      %c0_12 = arith.constant 0 : index
      %26 = vector.load %arg6[%c0_11, %c0_12] : memref<16x128xf32, #tpu.memory_space<vmem>>, vector<16x128xf32>
      %27 = vector.broadcast %13 : vector<1x128xf32> to vector<16x128xf32>
      %28 = arith.addf %26, %27 : vector<16x128xf32>
      %29 = vector.broadcast %25 : vector<16x1xf32> to vector<16x128xf32>
      %30 = arith.mulf %28, %29 : vector<16x128xf32>
      %cst_13 = arith.constant dense<0.000000e+00> : vector<128xf32>
      %31 = vector.multi_reduction <add>, %30, %cst_13 [0] : vector<16x128xf32> to vector<128xf32>
      %32 = vector.shape_cast %31 : vector<128xf32> to vector<1x128xf32>
      %cst_14 = arith.constant 2.500000e-01 : f32
      %33 = vector.broadcast %cst_14 : f32 to vector<1x128xf32>
      %34 = arith.mulf %32, %33 : vector<1x128xf32>
      %35 = vector.broadcast %34 : vector<1x128xf32> to vector<16x128xf32>
      %36 = arith.subf %28, %35 : vector<16x128xf32>
      %37 = arith.mulf %36, %36 : vector<16x128xf32>
      %38 = vector.broadcast %25 : vector<16x1xf32> to vector<16x128xf32>
      %39 = arith.mulf %37, %38 : vector<16x128xf32>
      %cst_15 = arith.constant dense<0.000000e+00> : vector<128xf32>
      %40 = vector.multi_reduction <add>, %39, %cst_15 [0] : vector<16x128xf32> to vector<128xf32>
      %41 = vector.shape_cast %40 : vector<128xf32> to vector<1x128xf32>
      %cst_16 = arith.constant 2.500000e-01 : f32
      %42 = vector.broadcast %cst_16 : f32 to vector<1x128xf32>
      %43 = arith.mulf %41, %42 : vector<1x128xf32>
      %cst_17 = arith.constant 9.99999974E-6 : f32
      %44 = vector.broadcast %cst_17 : f32 to vector<1x128xf32>
      %45 = arith.addf %43, %44 : vector<1x128xf32>
      %46 = math.rsqrt %45 : vector<1x128xf32>
      %47 = vector.broadcast %46 : vector<1x128xf32> to vector<16x128xf32>
      %48 = arith.mulf %36, %47 : vector<16x128xf32>
      %49 = vector.broadcast %14 : vector<1x128xf32> to vector<16x128xf32>
      %50 = arith.mulf %48, %49 : vector<16x128xf32>
      %51 = vector.broadcast %15 : vector<1x128xf32> to vector<16x128xf32>
      %52 = arith.addf %50, %51 : vector<16x128xf32>
      %cst_18 = arith.constant 0.000000e+00 : f32
      %53 = vector.broadcast %cst_18 : f32 to vector<16x128xf32>
      %54 = arith.cmpf oge, %52, %53 : vector<16x128xf32>
      %cst_19 = arith.constant 2.000000e-01 : f32
      %55 = vector.broadcast %cst_19 : f32 to vector<16x128xf32>
      %56 = arith.mulf %55, %52 : vector<16x128xf32>
      %57 = arith.select %54, %52, %56 : vector<16x128xi1>, vector<16x128xf32>
      %58 = arith.truncf %57 : vector<16x128xf32> to vector<16x128xbf16>
      %c0_20 = arith.constant 0 : index
      %c0_21 = arith.constant 0 : index
      %59 = vector.load %arg3[%c0_20, %c0_21] : memref<128x256xbf16, #tpu.memory_space<vmem>>, vector<128x256xbf16>
      %cst_22 = arith.constant dense<0.000000e+00> : vector<16x256xf32>
      %60 = tpu.matmul %58, %59, %cst_22 {dimension_numbers = #tpu.dot_dimension_numbers<[1], [0], [0], [1], [0, 0, 1, 1], [], []>} : vector<16x128xbf16>, vector<128x256xbf16>, vector<16x256xf32> -> vector<16x256xf32>
      %61 = vector.broadcast %16 : vector<1x256xf32> to vector<16x256xf32>
      %62 = arith.addf %60, %61 : vector<16x256xf32>
      %63 = vector.broadcast %25 : vector<16x1xf32> to vector<16x256xf32>
      %64 = arith.mulf %62, %63 : vector<16x256xf32>
      %cst_23 = arith.constant dense<0.000000e+00> : vector<256xf32>
      %65 = vector.multi_reduction <add>, %64, %cst_23 [0] : vector<16x256xf32> to vector<256xf32>
      %66 = vector.shape_cast %65 : vector<256xf32> to vector<1x256xf32>
      %cst_24 = arith.constant 2.500000e-01 : f32
      %67 = vector.broadcast %cst_24 : f32 to vector<1x256xf32>
      %68 = arith.mulf %66, %67 : vector<1x256xf32>
      %69 = vector.broadcast %68 : vector<1x256xf32> to vector<16x256xf32>
      %70 = arith.subf %62, %69 : vector<16x256xf32>
      %71 = arith.mulf %70, %70 : vector<16x256xf32>
      %72 = vector.broadcast %25 : vector<16x1xf32> to vector<16x256xf32>
      %73 = arith.mulf %71, %72 : vector<16x256xf32>
      %cst_25 = arith.constant dense<0.000000e+00> : vector<256xf32>
      %74 = vector.multi_reduction <add>, %73, %cst_25 [0] : vector<16x256xf32> to vector<256xf32>
      %75 = vector.shape_cast %74 : vector<256xf32> to vector<1x256xf32>
      %cst_26 = arith.constant 2.500000e-01 : f32
      %76 = vector.broadcast %cst_26 : f32 to vector<1x256xf32>
      %77 = arith.mulf %75, %76 : vector<1x256xf32>
      %cst_27 = arith.constant 9.99999974E-6 : f32
      %78 = vector.broadcast %cst_27 : f32 to vector<1x256xf32>
      %79 = arith.addf %77, %78 : vector<1x256xf32>
      %80 = math.rsqrt %79 : vector<1x256xf32>
      %81 = vector.broadcast %80 : vector<1x256xf32> to vector<16x256xf32>
      %82 = arith.mulf %70, %81 : vector<16x256xf32>
      %83 = vector.broadcast %17 : vector<1x256xf32> to vector<16x256xf32>
      %84 = arith.mulf %82, %83 : vector<16x256xf32>
      %85 = vector.broadcast %18 : vector<1x256xf32> to vector<16x256xf32>
      %86 = arith.addf %84, %85 : vector<16x256xf32>
      %cst_28 = arith.constant 0.000000e+00 : f32
      %87 = vector.broadcast %cst_28 : f32 to vector<16x256xf32>
      %88 = arith.cmpf oge, %86, %87 : vector<16x256xf32>
      %cst_29 = arith.constant 2.000000e-01 : f32
      %89 = vector.broadcast %cst_29 : f32 to vector<16x256xf32>
      %90 = arith.mulf %89, %86 : vector<16x256xf32>
      %91 = arith.select %88, %86, %90 : vector<16x256xi1>, vector<16x256xf32>
      %92 = vector.broadcast %19 : vector<1x256xf32> to vector<16x256xf32>
      %93 = arith.mulf %91, %92 : vector<16x256xf32>
      %cst_30 = arith.constant dense<0.000000e+00> : vector<16xf32>
      %94 = vector.multi_reduction <add>, %93, %cst_30 [1] : vector<16x256xf32> to vector<16xf32>
      %95 = vector.shape_cast %94 : vector<16xf32> to vector<16x1xf32>
      %96 = vector.broadcast %20 : vector<1x1xf32> to vector<16x1xf32>
      %97 = arith.addf %95, %96 : vector<16x1xf32>
      %98 = arith.negf %97 : vector<16x1xf32>
      %99 = math.exp %98 : vector<16x1xf32>
      %cst_31 = arith.constant 1.000000e+00 : f32
      %100 = vector.broadcast %cst_31 : f32 to vector<16x1xf32>
      %101 = arith.addf %100, %99 : vector<16x1xf32>
      %102 = arith.divf %100, %101 : vector<16x1xf32>
      %c0_32 = arith.constant 0 : index
      %c0_33 = arith.constant 0 : index
      %103 = vector.load %arg5[%c0_32, %c0_33] : memref<16x1xf32, #tpu.memory_space<vmem>>, vector<16x1xf32>
      tpu.vector_store %arg5[%c0_32, %c0_33], %102 {strides = array<i32>} : memref<16x1xf32, #tpu.memory_space<vmem>>, vector<16x1xf32>,
    } else {
    }
    return
  }
  func.func @transform_0(%arg0: i32) -> (i32, i32) {
    %c0_i32 = arith.constant 0 : i32
    %c0_i32_0 = arith.constant 0 : i32
    return %c0_i32, %arg0 : i32, i32
  }
  func.func @transform_1(%arg0: i32) -> (i32, i32) {
    %c0_i32 = arith.constant 0 : i32
    %c0_i32_0 = arith.constant 0 : i32
    return %arg0, %c0_i32 : i32, i32
  }
  func.func @transform_2(%arg0: i32) -> (i32, i32) {
    %c0_i32 = arith.constant 0 : i32
    %c0_i32_0 = arith.constant 0 : i32
    %c0_i32_1 = arith.constant 0 : i32
    return %c0_i32, %c0_i32_0 : i32, i32
  }
  func.func @transform_3(%arg0: i32) -> (i32, i32) {
    %c0_i32 = arith.constant 0 : i32
    %c0_i32_0 = arith.constant 0 : i32
    %c0_i32_1 = arith.constant 0 : i32
    return %c0_i32, %c0_i32_0 : i32, i32
  }
  func.func @transform_4(%arg0: i32) -> (i32, i32) {
    %c0_i32 = arith.constant 0 : i32
    %c0_i32_0 = arith.constant 0 : i32
    %c0_i32_1 = arith.constant 0 : i32
    return %c0_i32, %c0_i32_0 : i32, i32
  }
}

</mosaic_0001>

<llo_original>
// kernel: tpu_custom_call.1
$region0: #{tpu_custom_call.1}
  #allocation0 [shape = 'u32[]', space=smem, size = 0x4, offset = 0x4, fixed_abs, tag = 'smem constant byte address 0x4 - core index']
  #allocation1 [shape = 'u32[72,128]{1,0:T(1,128)}', space=vmem, size = 0x9000, scoped, tag = 'internal scratch']
  #allocation2 [shape = 'f32[16,128]{1,0:T(8,128)}', space=vmem, size = 0x2000, scoped, tag = 'scratch operand']
  %s0 = inlined_call_operand.hbm [shape: bf16[16,2048], index: 0, kind: input, shape index: {}]
  %s1 = inlined_call_operand.hbm [shape: bf16[2048,128], index: 1, kind: input, shape index: {}]
  %s2 = inlined_call_operand.hbm [shape: bf16[128,256], index: 2, kind: input, shape index: {}]
  %s3 = inlined_call_operand.hbm [shape: f32[8,256], index: 3, kind: input, shape index: {}]
  %s4 = inlined_call_operand.vmem [shape: f32[16,1], index: 4, kind: output, shape index: {}]
  %s5 = sld [smem:[#allocation0]]
  $region73: #{tpu_custom_call.1} parent=0
    _
  %s7 = ssub.s32 1, %s5
  %s8 = scalar_select 0, %s7, %s5
  $region1: #{tpu_custom_call.1} parent=0
    #allocation3 [shape = 'u8[32768]{0}', space=vmem, size = 0x8000, scoped, tag = 'input window, operand 0']
    #allocation4 [shape = 's32[2]{0}', space=sflag, size = 0x8, scoped, tag = 'scoped memory for tpu_custom_call.1']
    #allocation5 [shape = 'u8[262144]{0}', space=vmem, size = 0x40000, scoped, tag = 'input window, operand 1']
    #allocation6 [shape = 's32[2]{0}', space=sflag, size = 0x8, scoped, tag = 'scoped memory for tpu_custom_call.1']
    #allocation7 [shape = 'u8[65536]{0}', space=vmem, size = 0x10000, scoped, tag = 'input window, operand 2, single buffered']
    #allocation8 [shape = 'u8[8192]{0}', space=vmem, size = 0x2000, scoped, tag = 'input window, operand 3, single buffered']
    #allocation9 [shape = 's32[1]{0}', space=sflag, size = 0x4, scoped, tag = 'scoped memory for tpu_custom_call.1']
    %9 = vsyncpa [#allocation4], 0
    %s10 = scalar_lea.sflag [#allocation4], 1
    %11 = vsyncpa %s10, 0
    %12 = vsyncpa [#allocation6], 0
    %s13 = scalar_lea.sflag [#allocation6], 1
    %14 = vsyncpa %s13, 0
    %15 = vsyncpa [#allocation9], 0
    loop: start=0, step=1, limit=6
    $region2: #{tpu_custom_call.1} parent=1 // loop_pre_header
      _
    $region3: #{tpu_custom_call.1} parent=1 // loop_header
      %s17 = sphi 0, %s21
      %p18 = scmp.ge.s32.totalorder %s17, 6
      %s27 = sphi 0, %s29
      %s30 = sphi 0, %s27
      %s31 = sphi 0, %s30
      %s47 = sphi 0, %s31
      %s53 = sphi 0, %s55
      %s56 = sphi 0, %s53
      %s57 = sphi 0, %s56
      %s73 = sphi 0, %s57
      %s77 = sphi 0, %s77
      %s79 = sphi 0, %s77
      %s80 = sphi 0, %s79
      %s94 = sphi 0, %s80
      %s98 = sphi 0, %s98
      %s100 = sphi 0, %s98
      %s101 = sphi 0, %s100
      %s115 = sphi 0, %s101
      %s119 = sphi 0, %s119
      %s121 = sphi 0, %s119
      %s122 = sphi 0, %s121
      %s136 = sphi 0, %s122
    $region4: #{tpu_custom_call.1} parent=1 // loop_header_branch
      %20 = sbr.rel (%p18) target = $region8
    $region5: #{tpu_custom_call.1} parent=1 // loop_body
      %s22 = ssub.s32 %s17, 1
      %s23 = ssub.s32 %s17, 2
      %s24 = sadd.s32 %s17, 1
      %s25 = ssub.s32 %s17, %s24
      %p26 = scmp.eq.s32.totalorder %s25, 0
      %s28 = sadd.s32 %s27, 1
      %s29 = scalar_select %p26, %s27, %s28
      %p32 = pneg %p26
      %p33 = scmp.eq.s32.totalorder %s17, 3
      %p34 = por %p32, %p33
      %p35 = scmp.ne.s32.totalorder %s27, %s30
      %p36 = scmp.eq.s32.totalorder %s17, 0
      %p37 = por %p35, %p36
      %p38 = scmp.ne.s32.totalorder %s27, %s30
      %p39 = scmp.eq.s32.totalorder %s22, 3
      %p40 = por %p38, %p39
      %p41 = scmp.ne.s32.totalorder %s30, %s31
      %p42 = scmp.eq.s32.totalorder %s22, 0
      %p43 = por %p41, %p42
      %p44 = scmp.ne.s32.totalorder %s30, %s31
      %p45 = scmp.eq.s32.totalorder %s23, 3
      %p46 = por %p44, %p45
      %p48 = scmp.ne.s32.totalorder %s31, %s47
      %p49 = scmp.eq.s32.totalorder %s23, 0
      %p50 = por %p48, %p49
      %s51 = ssub.s32 %s17, %s24
      %p52 = scmp.eq.s32.totalorder %s51, 0
      %s54 = sadd.s32 %s53, 1
      %s55 = scalar_select %p52, %s53, %s54
      %p58 = pneg %p52
      %p59 = scmp.eq.s32.totalorder %s17, 3
      %p60 = por %p58, %p59
      %p61 = scmp.ne.s32.totalorder %s53, %s56
      %p62 = scmp.eq.s32.totalorder %s17, 0
      %p63 = por %p61, %p62
      %p64 = scmp.ne.s32.totalorder %s53, %s56
      %p65 = scmp.eq.s32.totalorder %s22, 3
      %p66 = por %p64, %p65
      %p67 = scmp.ne.s32.totalorder %s56, %s57
      %p68 = scmp.eq.s32.totalorder %s22, 0
      %p69 = por %p67, %p68
      %p70 = scmp.ne.s32.totalorder %s56, %s57
      %p71 = scmp.eq.s32.totalorder %s23, 3
      %p72 = por %p70, %p71
      %p74 = scmp.ne.s32.totalorder %s57, %s73
      %p75 = scmp.eq.s32.totalorder %s23, 0
      %p76 = por %p74, %p75
      %s78 = sadd.s32 %s77, 1
      %p81 = scmp.eq.s32.totalorder %s17, 3
      %p82 = scmp.ne.s32.totalorder %s77, %s79
      %p83 = scmp.eq.s32.totalorder %s17, 0
      %p84 = por %p82, %p83
      %p85 = scmp.ne.s32.totalorder %s77, %s79
      %p86 = scmp.eq.s32.totalorder %s22, 3
      %p87 = por %p85, %p86
      %p88 = scmp.ne.s32.totalorder %s79, %s80
      %p89 = scmp.eq.s32.totalorder %s22, 0
      %p90 = por %p88, %p89
      %p91 = scmp.ne.s32.totalorder %s79, %s80
      %p92 = scmp.eq.s32.totalorder %s23, 3
      %p93 = por %p91, %p92
      %p95 = scmp.ne.s32.totalorder %s80, %s94
      %p96 = scmp.eq.s32.totalorder %s23, 0
      %p97 = por %p95, %p96
      %s99 = sadd.s32 %s98, 1
      %p102 = scmp.eq.s32.totalorder %s17, 3
      %p103 = scmp.ne.s32.totalorder %s98, %s100
      %p104 = scmp.eq.s32.totalorder %s17, 0
      %p105 = por %p103, %p104
      %p106 = scmp.ne.s32.totalorder %s98, %s100
      %p107 = scmp.eq.s32.totalorder %s22, 3
      %p108 = por %p106, %p107
      %p109 = scmp.ne.s32.totalorder %s100, %s101
      %p110 = scmp.eq.s32.totalorder %s22, 0
      %p111 = por %p109, %p110
      %p112 = scmp.ne.s32.totalorder %s100, %s101
      %p113 = scmp.eq.s32.totalorder %s23, 3
      %p114 = por %p112, %p113
      %p116 = scmp.ne.s32.totalorder %s101, %s115
      %p117 = scmp.eq.s32.totalorder %s23, 0
      %p118 = por %p116, %p117
      %s120 = sadd.s32 %s119, 1
      %p123 = scmp.eq.s32.totalorder %s17, 3
      %p124 = scmp.ne.s32.totalorder %s119, %s121
      %p125 = scmp.eq.s32.totalorder %s17, 0
      %p126 = por %p124, %p125
      %p127 = scmp.ne.s32.totalorder %s119, %s121
      %p128 = scmp.eq.s32.totalorder %s22, 3
      %p129 = por %p127, %p128
      %p130 = scmp.ne.s32.totalorder %s121, %s122
      %p131 = scmp.eq.s32.totalorder %s22, 0
      %p132 = por %p130, %p131
      %p133 = scmp.ne.s32.totalorder %s121, %s122
      %p134 = scmp.eq.s32.totalorder %s23, 3
      %p135 = por %p133, %p134
      %p137 = scmp.ne.s32.totalorder %s122, %s136
      %p138 = scmp.eq.s32.totalorder %s23, 0
      %p139 = por %p137, %p138
      %p140 = scmp.le.s32.totalorder 1, %s17
      %p141 = scmp.lt.s32.totalorder %s17, 5
      %p142 = pnand %p140, %p141
      %p143 = pneg %p142
      // Predicated region
      $region9: #{tpu_custom_call.1} parent=5 // pred_check
        _
      $region10: #{tpu_custom_call.1} parent=5 // pred_check_branch
        %145 = sbr.rel (%p142) target = $region12
      $region11: #{tpu_custom_call.1} parent=5 // pred_region
        %s146 = ssub.s32 %s17, 1
        // Predicated region
        $region13: #{tpu_custom_call.1} parent=11 // pred_check
          %p147 = pneg %p90
        $region14: #{tpu_custom_call.1} parent=11 // pred_check_branch
          %149 = sbr.rel (%p147) target = $region16
        $region15: #{tpu_custom_call.1} parent=11 // pred_region
          %151 = vsyncadd [#allocation6], 0
          %s152 = sshll.u32 %s2, 4
          %s153 = int_to_ptr.hbm [resolvable:$true] %s152
          %s154 = sshll.u32 [#allocation7], 4
          %s155 = int_to_ptr.vmem [resolvable:$true] %s154
          %160 = dma.hbm_to_vmem [thread:$0]  %s153, 2048, %s155, [#allocation6], 128, 128, 8
        $region16: #{tpu_custom_call.1} parent=11 // pred_fallthru
          _
        // Predicated region
        $region17: #{tpu_custom_call.1} parent=11 // pred_check
          %p161 = pneg %p111
        $region18: #{tpu_custom_call.1} parent=11 // pred_check_branch
          %163 = sbr.rel (%p161) target = $region20
        $region19: #{tpu_custom_call.1} parent=11 // pred_region
          %165 = vsyncadd [#allocation9], 0
          %s167 = sshll.u32 %s3, 4
          %s168 = int_to_ptr.hbm [resolvable:$true] %s167
          %s169 = sshll.u32 [#allocation8], 4
          %s170 = int_to_ptr.vmem [resolvable:$true] %s169
          %172 = dma.hbm_to_vmem [thread:$0]  %s168, 256, %s170, [#allocation9]
        $region20: #{tpu_custom_call.1} parent=11 // pred_fallthru
          _
      $region12: #{tpu_custom_call.1} parent=5 // pred_fallthru
        _
      %p173 = scmp.lt.s32.totalorder %s17, 4
      // Predicated region
      $region21: #{tpu_custom_call.1} parent=5 // pred_check
        %p174 = pneg %p173
      $region22: #{tpu_custom_call.1} parent=5 // pred_check_branch
        %176 = sbr.rel (%p174) target = $region24
      $region23: #{tpu_custom_call.1} parent=5 // pred_region
        // Predicated region
        $region25: #{tpu_custom_call.1} parent=23 // pred_check
          %p177 = pneg %p37
        $region26: #{tpu_custom_call.1} parent=23 // pred_check_branch
          %179 = sbr.rel (%p177) target = $region28
        $region27: #{tpu_custom_call.1} parent=23 // pred_region
          %s180 = sand.u32 %s27, 1
          %s181 = scalar_lea.sflag [#allocation4], %s180
          %s182 = sand.u32 %s27, 1
          %s183 = smul.addr %s182, 32
          %s184 = scalar_lea.vmem [#allocation3], %s183
          %s185 = smul.u32 4, %s17
          %187 = vsyncadd %s181, 0
          %s188 = smul.addr %s185, 4
          %s189 = scalar_lea.hbm %s0, %s188
          %s190 = sshll.u32 %s189, 4
          %s191 = int_to_ptr.hbm [resolvable:$true] %s190
          %s192 = sshll.u32 %s184, 4
          %s193 = int_to_ptr.vmem [resolvable:$true] %s192
          %198 = dma.hbm_to_vmem [thread:$0]  %s191, 512, %s193, %s181, 1024, 256, 16
        $region28: #{tpu_custom_call.1} parent=23 // pred_fallthru
          _
        // Predicated region
        $region29: #{tpu_custom_call.1} parent=23 // pred_check
          %p199 = pneg %p63
        $region30: #{tpu_custom_call.1} parent=23 // pred_check_branch
          %201 = sbr.rel (%p199) target = $region32
        $region31: #{tpu_custom_call.1} parent=23 // pred_region
          %s202 = sand.u32 %s17, 1
          %s203 = scalar_lea.sflag [#allocation6], %s202
          %s204 = sand.u32 %s53, 1
          %s205 = smul.addr %s204, 256
          %s206 = scalar_lea.vmem [#allocation5], %s205
          %s207 = smul.u32 64, %s17
          %209 = vsyncadd %s203, 0
          %s210 = smul.addr %s207, 4
          %s211 = scalar_lea.hbm %s1, %s210
          %s212 = sshll.u32 %s211, 4
          %s213 = int_to_ptr.hbm [resolvable:$true] %s212
          %s214 = sshll.u32 %s206, 4
          %s215 = int_to_ptr.vmem [resolvable:$true] %s214
          %220 = dma.hbm_to_vmem [thread:$0]  %s213, 4096, %s215, %s203, 64, 64, 4
        $region32: #{tpu_custom_call.1} parent=23 // pred_fallthru
          _
      $region24: #{tpu_custom_call.1} parent=5 // pred_fallthru
        _
      %p221 = scmp.le.s32.totalorder 1, %s17
      %p222 = scmp.lt.s32.totalorder %s17, 5
      %p223 = pnand %p221, %p222
      %p224 = pneg %p223
      // Predicated region
      $region33: #{tpu_custom_call.1} parent=5 // pred_check
        _
      $region34: #{tpu_custom_call.1} parent=5 // pred_check_branch
        %226 = sbr.rel (%p223) target = $region36
      $region35: #{tpu_custom_call.1} parent=5 // pred_region
        %s227 = ssub.s32 %s17, 1
        %s228 = sand.u32 %s30, 1
        %s229 = scalar_lea.sflag [#allocation4], %s228
        %s230 = sand.u32 %s30, 1
        %s231 = smul.addr %s230, 32
        %s232 = scalar_lea.vmem [#allocation3], %s231
        // Predicated region
        $region37: #{tpu_custom_call.1} parent=35 // pred_check
          %p233 = pneg %p43
        $region38: #{tpu_custom_call.1} parent=35 // pred_check_branch
          %235 = sbr.rel (%p233) target = $region40
        $region39: #{tpu_custom_call.1} parent=35 // pred_region
          %237 = dma.done %s229, 512
        $region40: #{tpu_custom_call.1} parent=35 // pred_fallthru
          _
        %s238 = sand.u32 %s22, 1
        %s239 = scalar_lea.sflag [#allocation6], %s238
        %s240 = sand.u32 %s56, 1
        %s241 = smul.addr %s240, 256
        %s242 = scalar_lea.vmem [#allocation5], %s241
        // Predicated region
        $region41: #{tpu_custom_call.1} parent=35 // pred_check
          %p243 = pneg %p69
        $region42: #{tpu_custom_call.1} parent=35 // pred_check_branch
          %245 = sbr.rel (%p243) target = $region44
        $region43: #{tpu_custom_call.1} parent=35 // pred_region
          %247 = dma.done %s239, 4096
        $region44: #{tpu_custom_call.1} parent=35 // pred_fallthru
          _
        // Predicated region
        $region45: #{tpu_custom_call.1} parent=35 // pred_check
          %p248 = pneg %p90
        $region46: #{tpu_custom_call.1} parent=35 // pred_check_branch
          %250 = sbr.rel (%p248) target = $region48
        $region47: #{tpu_custom_call.1} parent=35 // pred_region
          %252 = dma.done [#allocation6], 2048
        $region48: #{tpu_custom_call.1} parent=35 // pred_fallthru
          _
        // Predicated region
        $region49: #{tpu_custom_call.1} parent=35 // pred_check
          %p253 = pneg %p111
        $region50: #{tpu_custom_call.1} parent=35 // pred_check_branch
          %255 = sbr.rel (%p253) target = $region52
        $region51: #{tpu_custom_call.1} parent=35 // pred_region
          %257 = dma.done [#allocation9], 256
        $region52: #{tpu_custom_call.1} parent=35 // pred_fallthru
          _
        %s258 = sand.u32 %s30, 1
        %s259 = scalar_lea.sflag [#allocation4], %s258
        %s260 = sand.u32 %s30, 1
        %s261 = smul.addr %s260, 32
        %s262 = scalar_lea.vmem [#allocation3], %s261
        %p263 = pneg %p43
        %p264 = pneg %p40
        %s265 = sand.u32 %s22, 1
        %s266 = scalar_lea.sflag [#allocation6], %s265
        %s267 = sand.u32 %s56, 1
        %s268 = smul.addr %s267, 256
        %s269 = scalar_lea.vmem [#allocation5], %s268
        %p270 = pneg %p69
        %p271 = pneg %p66
        %p272 = pneg %p90
        %p273 = pneg %p87
        %p274 = pneg %p111
        %p275 = pneg %p108
        %p276 = pneg %p132
        %p277 = pneg %p129
        %s278 = smul.u32 4, %s22
        %s279 = smul.u32 64, %s22
        %p280 = scmp.eq.s32.totalorder %s22, 0
        // Predicated region
        $region53: #{tpu_custom_call.1} parent=35 // pred_check
          %p281 = pneg %p280
        $region54: #{tpu_custom_call.1} parent=35 // pred_check_branch
          %283 = sbr.rel (%p281) target = $region56
        $region55: #{tpu_custom_call.1} parent=35 // pred_region
          %284 = vst [vmem:[#allocation2] sm:$0xff] 0.0
          %285 = vst [vmem:[#allocation2 + $0x8] sm:$0xff] 0.0
        $region56: #{tpu_custom_call.1} parent=35 // pred_fallthru
          _
        %v286 = vld [vmem:[#allocation2] sm:$0xff]
        %v287 = vld [vmem:[#allocation2 + $0x8] sm:$0xff]
        %v288 = vld [vmem:[%s232] sm:$0xff]
        %v289 = vld [vmem:[%s232 + $0x8] sm:$0xff]
        %v290 = vld [vmem:[%s232 + $0x10] sm:$0xff]
        %v291 = vld [vmem:[%s232 + $0x18] sm:$0xff]
        %v292 = vld [vmem:[%s242] sm:$0xf]
        %v293 = vld [vmem:[%s242 + $0x4] sm:$0xf]
        %v294 = vld [vmem:[%s242 + $0x8] sm:$0xf]
        %v295 = vld [vmem:[%s242 + $0xc] sm:$0xf]
        %v296 = vld [vmem:[%s242 + $0x10] sm:$0xf]
        %v297 = vld [vmem:[%s242 + $0x14] sm:$0xf]
        %v298 = vld [vmem:[%s242 + $0x18] sm:$0xf]
        %v299 = vld [vmem:[%s242 + $0x1c] sm:$0xf]
        %v300 = vld [vmem:[%s242 + $0x20] sm:$0xf]
        %v301 = vld [vmem:[%s242 + $0x24] sm:$0xf]
        %v302 = vld [vmem:[%s242 + $0x28] sm:$0xf]
        %v303 = vld [vmem:[%s242 + $0x2c] sm:$0xf]
        %v304 = vld [vmem:[%s242 + $0x30] sm:$0xf]
        %v305 = vld [vmem:[%s242 + $0x34] sm:$0xf]
        %v306 = vld [vmem:[%s242 + $0x38] sm:$0xf]
        %v307 = vld [vmem:[%s242 + $0x3c] sm:$0xf]
        %v308 = vld [vmem:[%s242 + $0x40] sm:$0xf]
        %v309 = vld [vmem:[%s242 + $0x44] sm:$0xf]
        %v310 = vld [vmem:[%s242 + $0x48] sm:$0xf]
        %v311 = vld [vmem:[%s242 + $0x4c] sm:$0xf]
        %v312 = vld [vmem:[%s242 + $0x50] sm:$0xf]
        %v313 = vld [vmem:[%s242 + $0x54] sm:$0xf]
        %v314 = vld [vmem:[%s242 + $0x58] sm:$0xf]
        %v315 = vld [vmem:[%s242 + $0x5c] sm:$0xf]
        %v316 = vld [vmem:[%s242 + $0x60] sm:$0xf]
        %v317 = vld [vmem:[%s242 + $0x64] sm:$0xf]
        %v318 = vld [vmem:[%s242 + $0x68] sm:$0xf]
        %v319 = vld [vmem:[%s242 + $0x6c] sm:$0xf]
        %v320 = vld [vmem:[%s242 + $0x70] sm:$0xf]
        %v321 = vld [vmem:[%s242 + $0x74] sm:$0xf]
        %v322 = vld [vmem:[%s242 + $0x78] sm:$0xf]
        %v323 = vld [vmem:[%s242 + $0x7c] sm:$0xf]
        %v324 = vld [vmem:[%s242 + $0x80] sm:$0xf]
        %v325 = vld [vmem:[%s242 + $0x84] sm:$0xf]
        %v326 = vld [vmem:[%s242 + $0x88] sm:$0xf]
        %v327 = vld [vmem:[%s242 + $0x8c] sm:$0xf]
        %v328 = vld [vmem:[%s242 + $0x90] sm:$0xf]
        %v329 = vld [vmem:[%s242 + $0x94] sm:$0xf]
        %v330 = vld [vmem:[%s242 + $0x98] sm:$0xf]
        %v331 = vld [vmem:[%s242 + $0x9c] sm:$0xf]
        %v332 = vld [vmem:[%s242 + $0xa0] sm:$0xf]
        %v333 = vld [vmem:[%s242 + $0xa4] sm:$0xf]
        %v334 = vld [vmem:[%s242 + $0xa8] sm:$0xf]
        %v335 = vld [vmem:[%s242 + $0xac] sm:$0xf]
        %v336 = vld [vmem:[%s242 + $0xb0] sm:$0xf]
        %v337 = vld [vmem:[%s242 + $0xb4] sm:$0xf]
        %v338 = vld [vmem:[%s242 + $0xb8] sm:$0xf]
        %v339 = vld [vmem:[%s242 + $0xbc] sm:$0xf]
        %v340 = vld [vmem:[%s242 + $0xc0] sm:$0xf]
        %v341 = vld [vmem:[%s242 + $0xc4] sm:$0xf]
        %v342 = vld [vmem:[%s242 + $0xc8] sm:$0xf]
        %v343 = vld [vmem:[%s242 + $0xcc] sm:$0xf]
        %v344 = vld [vmem:[%s242 + $0xd0] sm:$0xf]
        %v345 = vld [vmem:[%s242 + $0xd4] sm:$0xf]
        %v346 = vld [vmem:[%s242 + $0xd8] sm:$0xf]
        %v347 = vld [vmem:[%s242 + $0xdc] sm:$0xf]
        %v348 = vld [vmem:[%s242 + $0xe0] sm:$0xf]
        %v349 = vld [vmem:[%s242 + $0xe4] sm:$0xf]
        %v350 = vld [vmem:[%s242 + $0xe8] sm:$0xf]
        %v351 = vld [vmem:[%s242 + $0xec] sm:$0xf]
        %v352 = vld [vmem:[%s242 + $0xf0] sm:$0xf]
        %v353 = vld [vmem:[%s242 + $0xf4] sm:$0xf]
        %v354 = vld [vmem:[%s242 + $0xf8] sm:$0xf]
        %v355 = vld [vmem:[%s242 + $0xfc] sm:$0xf]
        %v360 = vunpack.c.l.b16 %v288
        %v361 = vunpack.c.h.b16 %v288
        %v362 = vunpack.c.l.b16 %v289
        %v363 = vunpack.c.h.b16 %v289
        %v364 = vunpack.c.l.b16 %v290
        %v365 = vunpack.c.h.b16 %v290
        %v366 = vunpack.c.l.b16 %v291
        %v367 = vunpack.c.h.b16 %v291
        %v368 = vpack.c.b16 %v364, %v360
        %v369 = vpack.c.b16 %v365, %v361
        %v370 = vpack.c.b16 %v366, %v362
        %v371 = vpack.c.b16 %v367, %v363
        %v440 = vunpack.c.l.b16 %v292
        %v441 = vunpack.c.l.b16 %v293
        %v442 = vunpack.c.l.b16 %v294
        %v443 = vunpack.c.l.b16 %v295
        %v444 = vunpack.c.l.b16 %v296
        %v445 = vunpack.c.l.b16 %v297
        %v446 = vunpack.c.l.b16 %v298
        %v447 = vunpack.c.l.b16 %v299
        %v448 = vunpack.c.l.b16 %v300
        %v449 = vunpack.c.l.b16 %v301
        %v450 = vunpack.c.l.b16 %v302
        %v451 = vunpack.c.l.b16 %v303
        %v452 = vunpack.c.l.b16 %v304
        %v453 = vunpack.c.l.b16 %v305
        %v454 = vunpack.c.l.b16 %v306
        %v455 = vunpack.c.l.b16 %v307
        %v456 = vunpack.c.l.b16 %v308
        %v457 = vunpack.c.l.b16 %v309
        %v458 = vunpack.c.l.b16 %v310
        %v459 = vunpack.c.l.b16 %v311
        %v460 = vunpack.c.l.b16 %v312
        %v461 = vunpack.c.l.b16 %v313
        %v462 = vunpack.c.l.b16 %v314
        %v463 = vunpack.c.l.b16 %v315
        %v464 = vunpack.c.l.b16 %v316
        %v465 = vunpack.c.l.b16 %v317
        %v466 = vunpack.c.l.b16 %v318
        %v467 = vunpack.c.l.b16 %v319
        %v468 = vunpack.c.l.b16 %v320
        %v469 = vunpack.c.l.b16 %v321
        %v470 = vunpack.c.l.b16 %v322
        %v471 = vunpack.c.l.b16 %v323
        %v472 = vunpack.c.l.b16 %v324
        %v473 = vunpack.c.l.b16 %v325
        %v474 = vunpack.c.l.b16 %v326
        %v475 = vunpack.c.l.b16 %v327
        %v476 = vunpack.c.l.b16 %v328
        %v477 = vunpack.c.l.b16 %v329
        %v478 = vunpack.c.l.b16 %v330
        %v479 = vunpack.c.l.b16 %v331
        %v480 = vunpack.c.l.b16 %v332
        %v481 = vunpack.c.l.b16 %v333
        %v482 = vunpack.c.l.b16 %v334
        %v483 = vunpack.c.l.b16 %v335
        %v484 = vunpack.c.l.b16 %v336
        %v485 = vunpack.c.l.b16 %v337
        %v486 = vunpack.c.l.b16 %v338
        %v487 = vunpack.c.l.b16 %v339
        %v488 = vunpack.c.l.b16 %v340
        %v489 = vunpack.c.l.b16 %v341
        %v490 = vunpack.c.l.b16 %v342
        %v491 = vunpack.c.l.b16 %v343
        %v492 = vunpack.c.l.b16 %v344
        %v493 = vunpack.c.l.b16 %v345
        %v494 = vunpack.c.l.b16 %v346
        %v495 = vunpack.c.l.b16 %v347
        %v496 = vunpack.c.l.b16 %v348
        %v497 = vunpack.c.l.b16 %v349
        %v498 = vunpack.c.l.b16 %v350
        %v499 = vunpack.c.l.b16 %v351
        %v500 = vunpack.c.l.b16 %v352
        %v501 = vunpack.c.l.b16 %v353
        %v502 = vunpack.c.l.b16 %v354
        %v503 = vunpack.c.l.b16 %v355
        %v504 = vpack.c.b16 %v441, %v440
        %v505 = vpack.c.b16 %v443, %v442
        %v506 = vpack.c.b16 %v445, %v444
        %v507 = vpack.c.b16 %v447, %v446
        %v508 = vpack.c.b16 %v449, %v448
        %v509 = vpack.c.b16 %v451, %v450
        %v510 = vpack.c.b16 %v453, %v452
        %v511 = vpack.c.b16 %v455, %v454
        %v512 = vpack.c.b16 %v457, %v456
        %v513 = vpack.c.b16 %v459, %v458
        %v514 = vpack.c.b16 %v461, %v460
        %v515 = vpack.c.b16 %v463, %v462
        %v516 = vpack.c.b16 %v465, %v464
        %v517 = vpack.c.b16 %v467, %v466
        %v518 = vpack.c.b16 %v469, %v468
        %v519 = vpack.c.b16 %v471, %v470
        %v520 = vpack.c.b16 %v473, %v472
        %v521 = vpack.c.b16 %v475, %v474
        %v522 = vpack.c.b16 %v477, %v476
        %v523 = vpack.c.b16 %v479, %v478
        %v524 = vpack.c.b16 %v481, %v480
        %v525 = vpack.c.b16 %v483, %v482
        %v526 = vpack.c.b16 %v485, %v484
        %v527 = vpack.c.b16 %v487, %v486
        %v528 = vpack.c.b16 %v489, %v488
        %v529 = vpack.c.b16 %v491, %v490
        %v530 = vpack.c.b16 %v493, %v492
        %v531 = vpack.c.b16 %v495, %v494
        %v532 = vpack.c.b16 %v497, %v496
        %v533 = vpack.c.b16 %v499, %v498
        %v534 = vpack.c.b16 %v501, %v500
        %v535 = vpack.c.b16 %v503, %v502
        %568 = vmatpush.bf16.msra.mxu0 %v511
        %569 = vmatpush.bf16.msra.mxu0 %v510
        %570 = vmatpush.bf16.msra.mxu0 %v509
        %571 = vmatpush.bf16.msra.mxu0 %v508
        %572 = vmatpush.bf16.msra.mxu0 %v507
        %573 = vmatpush.bf16.msra.mxu0 %v506
        %574 = vmatpush.bf16.msra.mxu0 %v505
        %575 = vmatpush.bf16.msra.mxu0 %v504
        %576 = vmatmul.bf16.gmra.mxu0 %v368
        %v577 = vpop.f32.mrf.mxu0
        %v578 = vadd.f32 0.0, %v577
        %v579 = vpop.f32.mrf.mxu0
        %v580 = vadd.f32 0.0, %v579
        %581 = vdwg.mxu0
        %582 = vmatpush.bf16.msra.mxu0 %v519
        %583 = vmatpush.bf16.msra.mxu0 %v518
        %584 = vmatpush.bf16.msra.mxu0 %v517
        %585 = vmatpush.bf16.msra.mxu0 %v516
        %586 = vmatpush.bf16.msra.mxu0 %v515
        %587 = vmatpush.bf16.msra.mxu0 %v514
        %588 = vmatpush.bf16.msra.mxu0 %v513
        %589 = vmatpush.bf16.msra.mxu0 %v512
        %590 = vmatmul.bf16.gmra.mxu0 %v369
        %v591 = vpop.f32.mrf.mxu0
        %v592 = vadd.f32 %v578, %v591
        %v593 = vpop.f32.mrf.mxu0
        %v594 = vadd.f32 %v580, %v593
        %595 = vdwg.mxu0
        %596 = vmatpush.bf16.msra.mxu0 %v527
        %597 = vmatpush.bf16.msra.mxu0 %v526
        %598 = vmatpush.bf16.msra.mxu0 %v525
        %599 = vmatpush.bf16.msra.mxu0 %v524
        %600 = vmatpush.bf16.msra.mxu0 %v523
        %601 = vmatpush.bf16.msra.mxu0 %v522
        %602 = vmatpush.bf16.msra.mxu0 %v521
        %603 = vmatpush.bf16.msra.mxu0 %v520
        %604 = vmatmul.bf16.gmra.mxu0 %v370
        %v605 = vpop.f32.mrf.mxu0
        %v606 = vadd.f32 %v592, %v605
        %v607 = vpop.f32.mrf.mxu0
        %v608 = vadd.f32 %v594, %v607
        %609 = vdwg.mxu0
        %610 = vmatpush.bf16.msra.mxu0 %v535
        %611 = vmatpush.bf16.msra.mxu0 %v534
        %612 = vmatpush.bf16.msra.mxu0 %v533
        %613 = vmatpush.bf16.msra.mxu0 %v532
        %614 = vmatpush.bf16.msra.mxu0 %v531
        %615 = vmatpush.bf16.msra.mxu0 %v530
        %616 = vmatpush.bf16.msra.mxu0 %v529
        %617 = vmatpush.bf16.msra.mxu0 %v528
        %618 = vmatmul.bf16.gmra.mxu0 %v371
        %v619 = vpop.f32.mrf.mxu0
        %v620 = vadd.f32 %v606, %v619
        %v621 = vpop.f32.mrf.mxu0
        %v622 = vadd.f32 %v608, %v621
        %623 = vdwg.mxu0
        %v624 = vadd.f32 %v286, %v620
        %v625 = vadd.f32 %v287, %v622
        %626 = vst [vmem:[#allocation2] sm:$0xff] %v624
        %627 = vst [vmem:[#allocation2 + $0x8] sm:$0xff] %v625
        %p628 = scmp.eq.s32.totalorder %s22, 3
        // Predicated region
        $region57: #{tpu_custom_call.1} parent=35 // pred_check
          %p629 = pneg %p628
        $region58: #{tpu_custom_call.1} parent=35 // pred_check_branch
          %631 = sbr.rel (%p629) target = $region60
        $region59: #{tpu_custom_call.1} parent=35 // pred_region
          %v632 = vld [vmem:[#allocation8] sm:$0xff]
          %v633 = vld [vmem:[#allocation8 + $0x8] sm:$0xff]
          %v634 = vlaneseq
          %v635 = vshrl.u32 %v634, 7
          %v636 = vadd.s32 %v635, 8
          %vm637 = vcmp.lt.s32.totalorder %v635, 4
          %vm638 = vcmp.lt.s32.totalorder %v636, 4
          %v639 = vsel %vm637, 1, 0
          %v640 = vsel %vm638, 1, 0
          %v641 = vcvt.s32.f32 %v639
          %v642 = vcvt.s32.f32 %v640
          %v643 = vld [vmem:[#allocation2] sm:$0xff]
          %v644 = vld [vmem:[#allocation2 + $0x8] sm:$0xff]
          %v645 = vperm.slane %v632, 0
          %v646 = vadd.f32 %v643, %v645
          %v647 = vadd.f32 %v644, %v645
          %v648 = vmul.f32 %v646, %v641
          %v649 = vmul.f32 %v647, %v642
          %v650 = vadd.f32 %v648, %v649
          %v651 = vrot.slane %v650, 4
          %v652 = vadd.f32 %v650, %v651
          %v653 = vrot.slane %v652, 2
          %v654 = vadd.f32 %v652, %v653
          %v655 = vrot.slane %v654, 1
          %v656 = vadd.f32 %v654, %v655
          %v657 = vmul.f32 %v656, 0.25
          %v658 = vsub.f32 %v646, %v657
          %v659 = vsub.f32 %v647, %v657
          %v660 = vmul.f32 %v658, %v658
          %v661 = vmul.f32 %v659, %v659
          %v662 = vmul.f32 %v660, %v641
          %v663 = vmul.f32 %v661, %v642
          %v664 = vadd.f32 %v662, %v663
          %v665 = vrot.slane %v664, 4
          %v666 = vadd.f32 %v664, %v665
          %v667 = vrot.slane %v666, 2
          %v668 = vadd.f32 %v666, %v667
          %v669 = vrot.slane %v668, 1
          %v670 = vadd.f32 %v668, %v669
          %v671 = vmul.f32 %v670, 0.25
          %v672 = vadd.f32 %v671, 1e-05
          %v673 = vrsqrt.pop %v672
          %v674 = vmul.f32 %v673, %v672
          %v675 = vmul.f32 %v674, %v673
          %v676 = vmul.f32 0.5, %v675
          %v677 = vsub.f32 1.5, %v676
          %v678 = vmul.f32 %v673, %v677
          %vm679 = vweird.f32 %v672
          %vm680 = vweird.f32 %v673
          %vm681 = vmor %vm679, %vm680
          %v682 = vsel %vm681, %v673, %v678
          %v683 = vmul.f32 %v658, %v682
          %v684 = vmul.f32 %v659, %v682
          %v685 = vperm.slane %v632, 1
          %v686 = vmul.f32 %v683, %v685
          %v687 = vmul.f32 %v684, %v685
          %v688 = vperm.slane %v632, 2
          %v689 = vadd.f32 %v686, %v688
          %v690 = vadd.f32 %v687, %v688
          %vm691 = vcmp.ge.f32.partialorder %v689, 0.0
          %vm692 = vcmp.ge.f32.partialorder %v690, 0.0
          %v693 = vmul.f32 %v689, 0.2
          %v694 = vmul.f32 %v690, 0.2
          %v695 = vsel %vm691, %v689, %v693
          %v696 = vsel %vm692, %v690, %v694
          %v697 = vpack.c.bf16 %v696, %v695
          %v698 = vld [vmem:[#allocation7] sm:$0xff]
          %v699 = vld [vmem:[#allocation7 + $0x8] sm:$0xff]
          %v700 = vld [vmem:[#allocation7 + $0x10] sm:$0xff]
          %v701 = vld [vmem:[#allocation7 + $0x18] sm:$0xff]
          %v702 = vld [vmem:[#allocation7 + $0x20] sm:$0xff]
          %v703 = vld [vmem:[#allocation7 + $0x28] sm:$0xff]
          %v704 = vld [vmem:[#allocation7 + $0x30] sm:$0xff]
          %v705 = vld [vmem:[#allocation7 + $0x38] sm:$0xff]
          %v706 = vld [vmem:[#allocation7 + $0x40] sm:$0xff]
          %v707 = vld [vmem:[#allocation7 + $0x48] sm:$0xff]
          %v708 = vld [vmem:[#allocation7 + $0x50] sm:$0xff]
          %v709 = vld [vmem:[#allocation7 + $0x58] sm:$0xff]
          %v710 = vld [vmem:[#allocation7 + $0x60] sm:$0xff]
          %v711 = vld [vmem:[#allocation7 + $0x68] sm:$0xff]
          %v712 = vld [vmem:[#allocation7 + $0x70] sm:$0xff]
          %v713 = vld [vmem:[#allocation7 + $0x78] sm:$0xff]
          %v714 = vperm.slane %v632, 3
          %v715 = vperm.slane %v633, 3
          %v732 = vunpack.c.l.b16 %v698
          %v733 = vunpack.c.h.b16 %v698
          %v734 = vunpack.c.l.b16 %v699
          %v735 = vunpack.c.h.b16 %v699
          %v736 = vunpack.c.l.b16 %v700
          %v737 = vunpack.c.h.b16 %v700
          %v738 = vunpack.c.l.b16 %v701
          %v739 = vunpack.c.h.b16 %v701
          %v740 = vunpack.c.l.b16 %v702
          %v741 = vunpack.c.h.b16 %v702
          %v742 = vunpack.c.l.b16 %v703
          %v743 = vunpack.c.h.b16 %v703
          %v744 = vunpack.c.l.b16 %v704
          %v745 = vunpack.c.h.b16 %v704
          %v746 = vunpack.c.l.b16 %v705
          %v747 = vunpack.c.h.b16 %v705
          %v748 = vunpack.c.l.b16 %v706
          %v749 = vunpack.c.h.b16 %v706
          %v750 = vunpack.c.l.b16 %v707
          %v751 = vunpack.c.h.b16 %v707
          %v752 = vunpack.c.l.b16 %v708
          %v753 = vunpack.c.h.b16 %v708
          %v754 = vunpack.c.l.b16 %v709
          %v755 = vunpack.c.h.b16 %v709
          %v756 = vunpack.c.l.b16 %v710
          %v757 = vunpack.c.h.b16 %v710
          %v758 = vunpack.c.l.b16 %v711
          %v759 = vunpack.c.h.b16 %v711
          %v760 = vunpack.c.l.b16 %v712
          %v761 = vunpack.c.h.b16 %v712
          %v762 = vunpack.c.l.b16 %v713
          %v763 = vunpack.c.h.b16 %v713
          %v764 = vpack.c.b16 %v734, %v732
          %v765 = vpack.c.b16 %v735, %v733
          %v766 = vpack.c.b16 %v738, %v736
          %v767 = vpack.c.b16 %v739, %v737
          %v768 = vpack.c.b16 %v742, %v740
          %v769 = vpack.c.b16 %v743, %v741
          %v770 = vpack.c.b16 %v746, %v744
          %v771 = vpack.c.b16 %v747, %v745
          %v772 = vpack.c.b16 %v750, %v748
          %v773 = vpack.c.b16 %v751, %v749
          %v774 = vpack.c.b16 %v754, %v752
          %v775 = vpack.c.b16 %v755, %v753
          %v776 = vpack.c.b16 %v758, %v756
          %v777 = vpack.c.b16 %v759, %v757
          %v778 = vpack.c.b16 %v762, %v760
          %v779 = vpack.c.b16 %v763, %v761
          %796 = vmatpush.bf16.msra.mxu0 %v778
          %797 = vmatpush.bf16.msra.mxu0 %v776
          %798 = vmatpush.bf16.msra.mxu0 %v774
          %799 = vmatpush.bf16.msra.mxu0 %v772
          %800 = vmatpush.bf16.msra.mxu0 %v770
          %801 = vmatpush.bf16.msra.mxu0 %v768
          %802 = vmatpush.bf16.msra.mxu0 %v766
          %803 = vmatpush.bf16.msra.mxu0 %v764
          %804 = vmatmul.bf16.gmra.mxu0 %v697
          %v805 = vpop.f32.mrf.mxu0
          %v806 = vadd.f32 %v714, %v805
          %v807 = vpop.f32.mrf.mxu0
          %v808 = vadd.f32 %v714, %v807
          %809 = vdwg.mxu0
          %810 = vmatpush.bf16.msra.mxu0 %v779
          %811 = vmatpush.bf16.msra.mxu0 %v777
          %812 = vmatpush.bf16.msra.mxu0 %v775
          %813 = vmatpush.bf16.msra.mxu0 %v773
          %814 = vmatpush.bf16.msra.mxu0 %v771
          %815 = vmatpush.bf16.msra.mxu0 %v769
          %816 = vmatpush.bf16.msra.mxu0 %v767
          %817 = vmatpush.bf16.msra.mxu0 %v765
          %818 = vmatmul.bf16.gmra.mxu0 %v697
          %v819 = vpop.f32.mrf.mxu0
          %v820 = vadd.f32 %v715, %v819
          %v821 = vpop.f32.mrf.mxu0
          %v822 = vadd.f32 %v715, %v821
          %823 = vdwg.mxu0
          %v824 = vmul.f32 %v806, %v641
          %v825 = vmul.f32 %v820, %v641
          %v826 = vmul.f32 %v808, %v642
          %v827 = vmul.f32 %v822, %v642
          %v828 = vadd.f32 %v824, %v826
          %v829 = vrot.slane %v828, 4
          %v830 = vadd.f32 %v828, %v829
          %v831 = vrot.slane %v830, 2
          %v832 = vadd.f32 %v830, %v831
          %v833 = vrot.slane %v832, 1
          %v834 = vadd.f32 %v832, %v833
          %v835 = vadd.f32 %v825, %v827
          %v836 = vrot.slane %v835, 4
          %v837 = vadd.f32 %v835, %v836
          %v838 = vrot.slane %v837, 2
          %v839 = vadd.f32 %v837, %v838
          %v840 = vrot.slane %v839, 1
          %v841 = vadd.f32 %v839, %v840
          %v842 = vmul.f32 %v834, 0.25
          %v843 = vmul.f32 %v841, 0.25
          %v844 = vsub.f32 %v806, %v842
          %v845 = vsub.f32 %v820, %v843
          %v846 = vsub.f32 %v808, %v842
          %v847 = vsub.f32 %v822, %v843
          %v848 = vmul.f32 %v844, %v844
          %v849 = vmul.f32 %v845, %v845
          %v850 = vmul.f32 %v846, %v846
          %v851 = vmul.f32 %v847, %v847
          %v852 = vmul.f32 %v848, %v641
          %v853 = vmul.f32 %v849, %v641
          %v854 = vmul.f32 %v850, %v642
          %v855 = vmul.f32 %v851, %v642
          %v856 = vadd.f32 %v852, %v854
          %v857 = vrot.slane %v856, 4
          %v858 = vadd.f32 %v856, %v857
          %v859 = vrot.slane %v858, 2
          %v860 = vadd.f32 %v858, %v859
          %v861 = vrot.slane %v860, 1
          %v862 = vadd.f32 %v860, %v861
          %v863 = vadd.f32 %v853, %v855
          %v864 = vrot.slane %v863, 4
          %v865 = vadd.f32 %v863, %v864
          %v866 = vrot.slane %v865, 2
          %v867 = vadd.f32 %v865, %v866
          %v868 = vrot.slane %v867, 1
          %v869 = vadd.f32 %v867, %v868
          %v870 = vmul.f32 %v862, 0.25
          %v871 = vmul.f32 %v869, 0.25
          %v872 = vadd.f32 %v870, 1e-05
          %v873 = vadd.f32 %v871, 1e-05
          %v874 = vrsqrt.pop %v872
          %v875 = vmul.f32 %v874, %v872
          %v876 = vmul.f32 %v875, %v874
          %v877 = vmul.f32 0.5, %v876
          %v878 = vsub.f32 1.5, %v877
          %v879 = vmul.f32 %v874, %v878
          %vm880 = vweird.f32 %v872
          %vm881 = vweird.f32 %v874
          %vm882 = vmor %vm880, %vm881
          %v883 = vsel %vm882, %v874, %v879
          %v884 = vrsqrt.pop %v873
          %v885 = vmul.f32 %v884, %v873
          %v886 = vmul.f32 %v885, %v884
          %v887 = vmul.f32 0.5, %v886
          %v888 = vsub.f32 1.5, %v887
          %v889 = vmul.f32 %v884, %v888
          %vm890 = vweird.f32 %v873
          %vm891 = vweird.f32 %v884
          %vm892 = vmor %vm890, %vm891
          %v893 = vsel %vm892, %v884, %v889
          %v894 = vmul.f32 %v844, %v883
          %v895 = vmul.f32 %v845, %v893
          %v896 = vmul.f32 %v846, %v883
          %v897 = vmul.f32 %v847, %v893
          %v898 = vperm.slane %v632, 4
          %v899 = vperm.slane %v633, 4
          %v900 = vmul.f32 %v894, %v898
          %v901 = vmul.f32 %v895, %v899
          %v902 = vmul.f32 %v896, %v898
          %v903 = vmul.f32 %v897, %v899
          %v904 = vperm.slane %v632, 5
          %v905 = vperm.slane %v633, 5
          %v906 = vadd.f32 %v900, %v904
          %v907 = vadd.f32 %v901, %v905
          %v908 = vadd.f32 %v902, %v904
          %v909 = vadd.f32 %v903, %v905
          %vm910 = vcmp.ge.f32.partialorder %v906, 0.0
          %vm911 = vcmp.ge.f32.partialorder %v907, 0.0
          %vm912 = vcmp.ge.f32.partialorder %v908, 0.0
          %vm913 = vcmp.ge.f32.partialorder %v909, 0.0
          %v914 = vmul.f32 %v906, 0.2
          %v915 = vmul.f32 %v907, 0.2
          %v916 = vmul.f32 %v908, 0.2
          %v917 = vmul.f32 %v909, 0.2
          %v918 = vsel %vm910, %v906, %v914
          %v919 = vsel %vm911, %v907, %v915
          %v920 = vsel %vm912, %v908, %v916
          %v921 = vsel %vm913, %v909, %v917
          %v922 = vperm.slane %v632, 6
          %v923 = vperm.slane %v633, 6
          %v924 = vmul.f32 %v918, %v922
          %v925 = vmul.f32 %v919, %v923
          %v926 = vmul.f32 %v920, %v922
          %v927 = vmul.f32 %v921, %v923
          %v928 = vadd.f32 %v924, %v925
          %929 = vadd.xlane.f32.xlu0 %v928
          %v930 = vpop.xlane.xlu0 %929
          %v931 = vadd.f32 %v926, %v927
          %932 = vadd.xlane.f32.xlu0 %v931
          %v933 = vpop.xlane.xlu0 %932
          %v934 = vperm.slane %v632, 7
          %v935 = vadd.f32 %v930, %v934
          %v936 = vadd.f32 %v933, %v934
          %v937 = vxor.u32 %v935, 2147483648
          %v938 = vxor.u32 %v936, 2147483648
          %v939 = vmul.f32 %v937, 1.442695
          %v940 = vpow.pop %v939
          %v941 = vmul.f32 %v938, 1.442695
          %v942 = vpow.pop %v941
          %v943 = vadd.f32 %v940, 1.0
          %v944 = vadd.f32 %v942, 1.0
          %v945 = vrcp.pop %v943
          %v946 = vmul.f32 %v943, %v945
          %v947 = vsub.f32 1.0, %v946
          %v948 = vmul.f32 %v945, %v947
          %v949 = vadd.f32 %v945, %v948
          %vm950 = vweird.f32 %v943
          %vm951 = vweird.f32 %v945
          %vm952 = vmor %vm950, %vm951
          %v953 = vsel %vm952, %v945, %v949
          %v954 = vand.u32 2147483647, %v943
          %vm955 = vcmp.eq.f32.partialorder %v954, 8.507059e+37
          %v956 = vand.u32 %v943, 2147483648
          %v957 = vor.u32 1.1754944e-38, %v956
          %v958 = vsel %vm955, %v957, %v953
          %v959 = vmul.f32 1.0, %v958
          %v960 = vrcp.pop %v944
          %v961 = vmul.f32 %v944, %v960
          %v962 = vsub.f32 1.0, %v961
          %v963 = vmul.f32 %v960, %v962
          %v964 = vadd.f32 %v960, %v963
          %vm965 = vweird.f32 %v944
          %vm966 = vweird.f32 %v960
          %vm967 = vmor %vm965, %vm966
          %v968 = vsel %vm967, %v960, %v964
          %v969 = vand.u32 2147483647, %v944
          %vm970 = vcmp.eq.f32.partialorder %v969, 8.507059e+37
          %v971 = vand.u32 %v944, 2147483648
          %v972 = vor.u32 1.1754944e-38, %v971
          %v973 = vsel %vm970, %v972, %v968
          %v974 = vmul.f32 1.0, %v973
          %vm975 = vcmask 7168
          %976 = vst.msk [vmem:[%s4] sm:$0xff] %vm975, %v959
          %977 = vst.msk [vmem:[%s4 + $0x8] sm:$0xff] %vm975, %v974
        $region60: #{tpu_custom_call.1} parent=35 // pred_fallthru
          _
        // Predicated region
        $region61: #{tpu_custom_call.1} parent=35 // pred_check
          %p978 = pneg %p129
        $region62: #{tpu_custom_call.1} parent=35 // pred_check_branch
          %980 = sbr.rel (%p978) target = $region64
        $region63: #{tpu_custom_call.1} parent=35 // pred_region
          _
        $region64: #{tpu_custom_call.1} parent=35 // pred_fallthru
          _
        // Predicated region
        $region65: #{tpu_custom_call.1} parent=35 // pred_check
          %p981 = pneg %p129
        $region66: #{tpu_custom_call.1} parent=35 // pred_check_branch
          %983 = sbr.rel (%p981) target = $region68
        $region67: #{tpu_custom_call.1} parent=35 // pred_region
          _
        $region68: #{tpu_custom_call.1} parent=35 // pred_fallthru
          _
      $region36: #{tpu_custom_call.1} parent=5 // pred_fallthru
        _
      %p984 = scmp.le.s32.totalorder 2, %s17
      // Predicated region
      $region69: #{tpu_custom_call.1} parent=5 // pred_check
        %p985 = pneg %p984
      $region70: #{tpu_custom_call.1} parent=5 // pred_check_branch
        %987 = sbr.rel (%p985) target = $region72
      $region71: #{tpu_custom_call.1} parent=5 // pred_region
        %s988 = ssub.s32 %s17, 2
      $region72: #{tpu_custom_call.1} parent=5 // pred_fallthru
        _
    $region6: #{tpu_custom_call.1} parent=1 // loop_footer
      %s21 = sadd.s32 1, %s17
    $region7: #{tpu_custom_call.1} parent=1 // loop_footer_branch
      %16 = sbr.rel target = $region3
    $region8: #{tpu_custom_call.1} parent=1 // loop_exit
      _
    %989 = vsyncpa [#allocation4], 1
    %s990 = scalar_lea.sflag [#allocation4], 1
    %991 = vsyncpa %s990, 1
    %992 = vsyncpa [#allocation6], 1
    %s993 = scalar_lea.sflag [#allocation6], 1
    %994 = vsyncpa %s993, 1
    %995 = vsyncpa [#allocation9], 1

</llo_original>
